<compile_context>
chip_gen: v7x
topology: tpu7x:2x2x1
jax: 0.10.0
libtpu: 0.0.40
codegen_flags: <defaults>
</compile_context>

<pallas_src>
import functools

import jax
import jax.numpy as jnp
from jax import lax
from jax.experimental import pallas as pl
from jax.experimental.pallas import tpu as pltpu

LN_EPS = 1e-5


def _round_up(x, m):
    return ((x + m - 1) // m) * m


def _pad_to(a, shape):
    pads = [(0, t - s) for s, t in zip(a.shape, shape)]
    if all(p == (0, 0) for p in pads):
        return a
    return jnp.pad(a, pads)


def _make_block_kernel(has_residual: bool, d_actual: int):
    """Fused residual-add + LayerNorm + linear mixer kernel.

    Padded lanes (>= d_actual) of gamma/beta/b/w are zero, so LN stats use
    explicit division by d_actual and padded lanes contribute nothing.
    """
    inv_d = 1.0 / float(d_actual)

    def kernel(*refs):
        if has_residual:
            (hs_ref, res_ref, gamma_ref, beta_ref, w_ref, b_ref,
             out_hs_ref, out_res_ref) = refs
        else:
            (hs_ref, gamma_ref, beta_ref, w_ref, b_ref,
             out_hs_ref, out_res_ref) = refs

        x = hs_ref[...].astype(jnp.float32)
        if has_residual:
            r = res_ref[...].astype(jnp.float32) + x
        else:
            r = x

        # residual_in_fp32=True -> residual emitted as float32
        out_res_ref[...] = r.astype(out_res_ref.dtype)

        # Single-pass LayerNorm statistics (padded lanes are zero in r because the
        # wrapper zero-pads inputs, so sums are over the true D elements).
        s = jnp.sum(r, axis=-1, keepdims=True)
        sq = jnp.sum(r * r, axis=-1, keepdims=True)
        mean = s * inv_d
        var = jnp.maximum(sq * inv_d - mean * mean, 0.0)
        xn = (r - mean) * lax.rsqrt(var + LN_EPS)

        # gamma/beta are zero-padded past d_actual -> y has zeros in padded lanes.
        y = xn * gamma_ref[...].astype(jnp.float32) + beta_ref[...].astype(jnp.float32)

        # hidden_states = mixer(hidden_states) -- linear stand-in mixer on the MXU.
        # Matmul runs in the weight's dtype (bf16-capable), accumulates in f32.
        y = y.astype(w_ref.dtype)
        out = jnp.dot(y, w_ref[...], preferred_element_type=jnp.float32)
        out = out + b_ref[...].astype(jnp.float32)
        out_hs_ref[...] = out.astype(out_hs_ref.dtype)

    return kernel


def vim_block_forward(hidden_states, residual, params, *, tm=512):
    """Fused Block forward.

    hidden_states: (B, L, D)
    residual:      (B, L, D) or None
    params: dict with 'gamma' (D,), 'beta' (D,), 'w' (D, D), 'b' (D,)
    returns (hidden_states_out (B, L, D) in hidden_states dtype,
             residual_out      (B, L, D) float32)
    """
    B, L, D = hidden_states.shape
    N = B * L
    has_residual = residual is not None

    # Lane-align D to 128, row-tile size adapted to the problem (multiple of 8).
    Dp = _round_up(D, 128)
    tm_eff = min(int(tm), _round_up(N, 8))
    tm_eff = max(8, (tm_eff // 8) * 8)
    Np = _round_up(N, tm_eff)

    hs_dtype = hidden_states.dtype
    hs2d = _pad_to(hidden_states.reshape(N, D), (Np, Dp))
    if has_residual:
        res2d = _pad_to(residual.reshape(N, D), (Np, Dp))

    gamma = _pad_to(params["gamma"].reshape(1, D), (1, Dp))
    beta = _pad_to(params["beta"].reshape(1, D), (1, Dp))
    w = _pad_to(params["w"], (Dp, Dp))
    b = _pad_to(params["b"].reshape(1, D), (1, Dp))

    grid = (Np // tm_eff,)
    row_spec = pl.BlockSpec((tm_eff, Dp), lambda i: (i, 0))
    vec_spec = pl.BlockSpec((1, Dp), lambda i: (0, 0))
    mat_spec = pl.BlockSpec((Dp, Dp), lambda i: (0, 0))

    if has_residual:
        in_specs = [row_spec, row_spec, vec_spec, vec_spec, mat_spec, vec_spec]
        inputs = (hs2d, res2d, gamma, beta, w, b)
    else:
        in_specs = [row_spec, vec_spec, vec_spec, mat_spec, vec_spec]
        inputs = (hs2d, gamma, beta, w, b)

    # Rough HBM traffic / flops hint for XLA scheduling.
    itm = jnp.dtype(hs_dtype).itemsize
    n_row_streams_in = 2 if has_residual else 1
    bytes_accessed = (
        n_row_streams_in * Np * Dp * itm           # hs (+ residual) reads
        + Dp * Dp * jnp.dtype(w.dtype).itemsize    # weight read
        + 3 * Dp * 4                               # gamma/beta/b
        + Np * Dp * itm                            # hs out
        + Np * Dp * 4                              # residual out (fp32)
    )
    cost = pl.CostEstimate(
        flops=2 * Np * Dp * Dp,
        transcendentals=Np,
        bytes_accessed=int(bytes_accessed),
    )

    # Size the scoped VMEM limit: double-buffered row tiles + resident weight.
    rows_per_buf = tm_eff * Dp * (n_row_streams_in * itm + itm + 4)
    vmem_est = 2 * rows_per_buf + 2 * Dp * Dp * jnp.dtype(w.dtype).itemsize + (1 << 20)
    vmem_limit = int(min(96 * 1024 * 1024, max(32 * 1024 * 1024, vmem_est + (8 << 20))))

    kernel = _make_block_kernel(has_residual, D)

    out_hs, out_res = pl.pallas_call(
        kernel,
        out_shape=(
            jax.ShapeDtypeStruct((Np, Dp), hs_dtype),
            jax.ShapeDtypeStruct((Np, Dp), jnp.float32),  # residual_in_fp32=True
        ),
        grid_spec=pltpu.PrefetchScalarGridSpec(
            num_scalar_prefetch=0,
            grid=grid,
            in_specs=in_specs,
            out_specs=[row_spec, row_spec],
        ),
        compiler_params=pltpu.CompilerParams(
            dimension_semantics=("parallel",),
            vmem_limit_bytes=vmem_limit,
        ),
        cost_estimate=cost,
    )(*inputs)

    out_hs = out_hs[:N, :D].reshape(B, L, D)
    out_res = out_res[:N, :D].reshape(B, L, D)
    return out_hs, out_res


def _reference(hidden_states, residual, params):
    """Pure-JAX reference for correctness checking."""
    if residual is None:
        residual = hidden_states
    else:
        residual = residual + hidden_states
    r = residual.astype(jnp.float32)
    mean = jnp.mean(r, axis=-1, keepdims=True)
    var = jnp.mean((r - mean) ** 2, axis=-1, keepdims=True)
    y = (r - mean) / jnp.sqrt(var + LN_EPS)
    y = y * params["gamma"] + params["beta"]
    hs = y @ params["w"] + params["b"]
    return hs.astype(hidden_states.dtype), r


if __name__ == "__main__":
    key = jax.random.PRNGKey(0)
    B, L, D = 2, 8, 32  # small shapes consistent with a (batch, seq, dim) Vim block

    k_hs, k_res, k_w, k_b = jax.random.split(key, 4)
    hidden_states = jax.random.normal(k_hs, (B, L, D), dtype=jnp.float32)
    residual = jax.random.normal(k_res, (B, L, D), dtype=jnp.float32)

    # Deterministic parameter init (LayerNorm affine + linear stand-in mixer).
    params = {
        "gamma": jnp.ones((D,), jnp.float32),
        "beta": jnp.zeros((D,), jnp.float32),
        "w": jax.random.normal(k_w, (D, D), dtype=jnp.float32) * (1.0 / jnp.sqrt(D)),
        "b": jax.random.normal(k_b, (D,), dtype=jnp.float32) * 0.01,
    }

    # Case 1: residual provided.
    hs_out, res_out = vim_block_forward(hidden_states, residual, params)
    jax.block_until_ready(hs_out)
    jax.block_until_ready(res_out)
    hs_ref, res_ref = _reference(hidden_states, residual, params)
    assert jnp.allclose(hs_out, hs_ref, atol=1e-4, rtol=1e-4)
    assert jnp.allclose(res_out, res_ref, atol=1e-5, rtol=1e-5)

    # Case 2: residual is None (first layer) -- separate kernel, no residual stream.
    hs_out0, res_out0 = vim_block_forward(hidden_states, None, params)
    jax.block_until_ready(hs_out0)
    hs_ref0, res_ref0 = _reference(hidden_states, None, params)
    assert jnp.allclose(hs_out0, hs_ref0, atol=1e-4, rtol=1e-4)
    assert jnp.allclose(res_out0, res_ref0, atol=1e-5, rtol=1e-5)

    print("KERNEL_OK")
</pallas_src>

<mosaic_0001>
module attributes {stable_mosaic.version = 11 : i64} {
  func.func @kernel(%arg0: i32, %arg1: memref<16x128xf32, #tpu.memory_space<vmem>>, %arg2: memref<16x128xf32, #tpu.memory_space<vmem>>, %arg3: memref<1x128xf32, #tpu.memory_space<vmem>>, %arg4: memref<1x128xf32, #tpu.memory_space<vmem>>, %arg5: memref<128x128xf32, #tpu.memory_space<vmem>>, %arg6: memref<1x128xf32, #tpu.memory_space<vmem>>, %arg7: memref<16x128xf32, #tpu.memory_space<vmem>>, %arg8: memref<16x128xf32, #tpu.memory_space<vmem>>) attributes {dimension_semantics = [#tpu.dimension_semantics<parallel>], iteration_bounds = array<i64: 1>, scalar_prefetch = 0 : i64, scratch_operands = 0 : i64, tpu.core_type = #tpu.core_type<tc>, window_params = [{transform_indices = @transform_0, window_bounds = array<i64: 16, 128>}, {transform_indices = @transform_1, window_bounds = array<i64: 16, 128>}, {pipeline_mode = #tpu.pipeline_mode<synchronous>, transform_indices = @transform_2, window_bounds = array<i64: 1, 128>}, {pipeline_mode = #tpu.pipeline_mode<synchronous>, transform_indices = @transform_3, window_bounds = array<i64: 1, 128>}, {pipeline_mode = #tpu.pipeline_mode<synchronous>, transform_indices = @transform_4, window_bounds = array<i64: 128, 128>}, {pipeline_mode = #tpu.pipeline_mode<synchronous>, transform_indices = @transform_5, window_bounds = array<i64: 1, 128>}, {transform_indices = @transform_6, window_bounds = array<i64: 16, 128>}, {transform_indices = @transform_7, window_bounds = array<i64: 16, 128>}]} {
    %c0 = arith.constant 0 : index
    %c0_0 = arith.constant 0 : index
    %0 = vector.load %arg1[%c0, %c0_0] : memref<16x128xf32, #tpu.memory_space<vmem>>, vector<16x128xf32>
    %c0_1 = arith.constant 0 : index
    %c0_2 = arith.constant 0 : index
    %1 = vector.load %arg2[%c0_1, %c0_2] : memref<16x128xf32, #tpu.memory_space<vmem>>, vector<16x128xf32>
    %2 = arith.addf %1, %0 : vector<16x128xf32>
    %c0_3 = arith.constant 0 : index
    %c0_4 = arith.constant 0 : index
    %3 = vector.load %arg8[%c0_3, %c0_4] : memref<16x128xf32, #tpu.memory_space<vmem>>, vector<16x128xf32>
    tpu.vector_store %arg8[%c0_3, %c0_4], %2 {strides = array<i32>} : memref<16x128xf32, #tpu.memory_space<vmem>>, vector<16x128xf32>,
    %cst = arith.constant dense<0.000000e+00> : vector<16xf32>
    %4 = vector.multi_reduction <add>, %2, %cst [1] : vector<16x128xf32> to vector<16xf32>
    %5 = vector.shape_cast %4 : vector<16xf32> to vector<16x1xf32>
    %6 = arith.mulf %2, %2 : vector<16x128xf32>
    %cst_5 = arith.constant dense<0.000000e+00> : vector<16xf32>
    %7 = vector.multi_reduction <add>, %6, %cst_5 [1] : vector<16x128xf32> to vector<16xf32>
    %8 = vector.shape_cast %7 : vector<16xf32> to vector<16x1xf32>
    %cst_6 = arith.constant 3.125000e-02 : f32
    %9 = vector.broadcast %cst_6 : f32 to vector<16x1xf32>
    %10 = arith.mulf %5, %9 : vector<16x1xf32>
    %cst_7 = arith.constant 3.125000e-02 : f32
    %11 = vector.broadcast %cst_7 : f32 to vector<16x1xf32>
    %12 = arith.mulf %8, %11 : vector<16x1xf32>
    %13 = arith.mulf %10, %10 : vector<16x1xf32>
    %14 = arith.subf %12, %13 : vector<16x1xf32>
    %cst_8 = arith.constant 0.000000e+00 : f32
    %15 = vector.broadcast %cst_8 : f32 to vector<16x1xf32>
    %16 = arith.maximumf %14, %15 : vector<16x1xf32>
    %17 = vector.broadcast %10 : vector<16x1xf32> to vector<16x128xf32>
    %18 = arith.subf %2, %17 : vector<16x128xf32>
    %cst_9 = arith.constant 9.99999974E-6 : f32
    %19 = vector.broadcast %cst_9 : f32 to vector<16x1xf32>
    %20 = arith.addf %16, %19 : vector<16x1xf32>
    %21 = math.rsqrt %20 : vector<16x1xf32>
    %22 = vector.broadcast %21 : vector<16x1xf32> to vector<16x128xf32>
    %23 = arith.mulf %18, %22 : vector<16x128xf32>
    %c0_10 = arith.constant 0 : index
    %c0_11 = arith.constant 0 : index
    %24 = vector.load %arg3[%c0_10, %c0_11] : memref<1x128xf32, #tpu.memory_space<vmem>>, vector<1x128xf32>
    %25 = vector.broadcast %24 : vector<1x128xf32> to vector<16x128xf32>
    %26 = arith.mulf %23, %25 : vector<16x128xf32>
    %c0_12 = arith.constant 0 : index
    %c0_13 = arith.constant 0 : index
    %27 = vector.load %arg4[%c0_12, %c0_13] : memref<1x128xf32, #tpu.memory_space<vmem>>, vector<1x128xf32>
    %28 = vector.broadcast %27 : vector<1x128xf32> to vector<16x128xf32>
    %29 = arith.addf %26, %28 : vector<16x128xf32>
    %c0_14 = arith.constant 0 : index
    %c0_15 = arith.constant 0 : index
    %30 = vector.load %arg5[%c0_14, %c0_15] : memref<128x128xf32, #tpu.memory_space<vmem>>, vector<128x128xf32>
    %cst_16 = arith.constant dense<0.000000e+00> : vector<16x128xf32>
    %31 = tpu.matmul %29, %30, %cst_16 {dimension_numbers = #tpu.dot_dimension_numbers<[1], [0], [0], [1], [0, 0, 1, 1], [], []>} : vector<16x128xf32>, vector<128x128xf32>, vector<16x128xf32> -> vector<16x128xf32>
    %c0_17 = arith.constant 0 : index
    %c0_18 = arith.constant 0 : index
    %32 = vector.load %arg6[%c0_17, %c0_18] : memref<1x128xf32, #tpu.memory_space<vmem>>, vector<1x128xf32>
    %33 = vector.broadcast %32 : vector<1x128xf32> to vector<16x128xf32>
    %34 = arith.addf %31, %33 : vector<16x128xf32>
    %c0_19 = arith.constant 0 : index
    %c0_20 = arith.constant 0 : index
    %35 = vector.load %arg7[%c0_19, %c0_20] : memref<16x128xf32, #tpu.memory_space<vmem>>, vector<16x128xf32>
    tpu.vector_store %arg7[%c0_19, %c0_20], %34 {strides = array<i32>} : memref<16x128xf32, #tpu.memory_space<vmem>>, vector<16x128xf32>,
    return
  }
  func.func @transform_0(%arg0: i32) -> (i32, i32) {
    %c0_i32 = arith.constant 0 : i32
    %c0_i32_0 = arith.constant 0 : i32
    return %arg0, %c0_i32 : i32, i32
  }
  func.func @transform_1(%arg0: i32) -> (i32, i32) {
    %c0_i32 = arith.constant 0 : i32
    %c0_i32_0 = arith.constant 0 : i32
    return %arg0, %c0_i32 : i32, i32
  }
  func.func @transform_2(%arg0: i32) -> (i32, i32) {
    %c0_i32 = arith.constant 0 : i32
    %c0_i32_0 = arith.constant 0 : i32
    %c0_i32_1 = arith.constant 0 : i32
    return %c0_i32, %c0_i32_0 : i32, i32
  }
  func.func @transform_3(%arg0: i32) -> (i32, i32) {
    %c0_i32 = arith.constant 0 : i32
    %c0_i32_0 = arith.constant 0 : i32
    %c0_i32_1 = arith.constant 0 : i32
    return %c0_i32, %c0_i32_0 : i32, i32
  }
  func.func @transform_4(%arg0: i32) -> (i32, i32) {
    %c0_i32 = arith.constant 0 : i32
    %c0_i32_0 = arith.constant 0 : i32
    %c0_i32_1 = arith.constant 0 : i32
    return %c0_i32, %c0_i32_0 : i32, i32
  }
  func.func @transform_5(%arg0: i32) -> (i32, i32) {
    %c0_i32 = arith.constant 0 : i32
    %c0_i32_0 = arith.constant 0 : i32
    %c0_i32_1 = arith.constant 0 : i32
    return %c0_i32, %c0_i32_0 : i32, i32
  }
  func.func @transform_6(%arg0: i32) -> (i32, i32) {
    %c0_i32 = arith.constant 0 : i32
    %c0_i32_0 = arith.constant 0 : i32
    return %arg0, %c0_i32 : i32, i32
  }
  func.func @transform_7(%arg0: i32) -> (i32, i32) {
    %c0_i32 = arith.constant 0 : i32
    %c0_i32_0 = arith.constant 0 : i32
    return %arg0, %c0_i32 : i32, i32
  }
}

</mosaic_0001>

<llo_original>
// kernel: tpu_custom_call.1
$region0: #{tpu_custom_call.1}
  #allocation0 [shape = 'u32[]', space=smem, size = 0x4, offset = 0x4, fixed_abs, tag = 'smem constant byte address 0x4 - core index']
  #allocation1 [shape = 'u32[144,128]{1,0:T(1,128)}', space=vmem, size = 0x12000, scoped, tag = 'internal scratch']
  %s0 = inlined_call_operand.hbm [shape: f32[16,128], index: 0, kind: input, shape index: {}]
  %s1 = inlined_call_operand.hbm [shape: f32[16,128], index: 1, kind: input, shape index: {}]
  %s2 = inlined_call_operand.vmem [shape: f32[1,128], index: 2, kind: input, shape index: {}]
  %s3 = inlined_call_operand.vmem [shape: f32[1,128], index: 3, kind: input, shape index: {}]
  %s4 = inlined_call_operand.hbm [shape: f32[128,128], index: 4, kind: input, shape index: {}]
  %s5 = inlined_call_operand.vmem [shape: f32[1,128], index: 5, kind: input, shape index: {}]
  %s6 = inlined_call_operand.hbm [shape: f32[16,128], index: 6, kind: output, shape index: {0}]
  %s7 = inlined_call_operand.hbm [shape: f32[16,128], index: 7, kind: output, shape index: {1}]
  %8 = xla_tuple %s6, %s7
  %s9 = sld [smem:[#allocation0]]
  $region54: #{tpu_custom_call.1} parent=0
    _
  %s11 = ssub.s32 1, %s9
  %s12 = scalar_select 0, %s11, %s9
  $region1: #{tpu_custom_call.1} parent=0
    #allocation2 [shape = 'u8[8192]{0}', space=vmem, size = 0x2000, scoped, tag = 'input window, operand 0, single buffered']
    #allocation3 [shape = 's32[1]{0}', space=sflag, size = 0x4, scoped, tag = 'scoped memory for tpu_custom_call.1']
    #allocation4 [shape = 's32[1]{0}', space=sflag, size = 0x4, scoped, tag = 'scoped memory for tpu_custom_call.1']
    #allocation5 [shape = 'u8[8192]{0}', space=vmem, size = 0x2000, scoped, tag = 'input window, operand 1, single buffered']
    #allocation6 [shape = 's32[1]{0}', space=sflag, size = 0x4, scoped, tag = 'scoped memory for tpu_custom_call.1']
    #allocation7 [shape = 'u8[65536]{0}', space=vmem, size = 0x10000, scoped, tag = 'input window, operand 4, single buffered']
    #allocation8 [shape = 'u8[8192]{0}', space=vmem, size = 0x2000, scoped, tag = 'output window, operand 0, single buffered']
    #allocation9 [shape = 'u8[8192]{0}', space=vmem, size = 0x2000, scoped, tag = 'output window, operand 1, single buffered']
    #allocation10 [shape = 's32[1]{0}', space=sflag, size = 0x4, scoped, tag = 'scoped memory for tpu_custom_call.1']
    %13 = vsyncpa [#allocation3], 0
    %14 = vsyncpa [#allocation6], 0
    %15 = vsyncpa [#allocation4], 0
    %16 = vsyncpa [#allocation10], 0
    // Predicated region
    $region2: #{tpu_custom_call.1} parent=1 // pred_check
      _
    $region3: #{tpu_custom_call.1} parent=1 // pred_check_branch
      %18 = sbr.rel (0) target = $region5
    $region4: #{tpu_custom_call.1} parent=1 // pred_region
      %s20 = ssub.s32 256, 256
      %21 = vsyncadd [#allocation3], %s20
      %s22 = sshll.u32 [#allocation2], 4
      %s23 = int_to_ptr.vmem [resolvable:$true] %s22
      %28 = dma.hbm_to_vmem [thread:$0]  %s0, 256, %s23, [#allocation3], 128, 128, 8
    $region5: #{tpu_custom_call.1} parent=1 // pred_fallthru
      _
    // Predicated region
    $region6: #{tpu_custom_call.1} parent=1 // pred_check
      _
    $region7: #{tpu_custom_call.1} parent=1 // pred_check_branch
      %30 = sbr.rel (0) target = $region9
    $region8: #{tpu_custom_call.1} parent=1 // pred_region
      %s32 = ssub.s32 256, 256
      %33 = vsyncadd [#allocation6], %s32
      %s34 = sshll.u32 [#allocation5], 4
      %s35 = int_to_ptr.vmem [resolvable:$true] %s34
      %40 = dma.hbm_to_vmem [thread:$0]  %s1, 256, %s35, [#allocation6], 128, 128, 8
    $region9: #{tpu_custom_call.1} parent=1 // pred_fallthru
      _
    // Predicated region
    $region10: #{tpu_custom_call.1} parent=1 // pred_check
      _
    $region11: #{tpu_custom_call.1} parent=1 // pred_check_branch
      %42 = sbr.rel (0) target = $region13
    $region12: #{tpu_custom_call.1} parent=1 // pred_region
      _
    $region13: #{tpu_custom_call.1} parent=1 // pred_fallthru
      _
    // Predicated region
    $region14: #{tpu_custom_call.1} parent=1 // pred_check
      _
    $region15: #{tpu_custom_call.1} parent=1 // pred_check_branch
      %44 = sbr.rel (0) target = $region17
    $region16: #{tpu_custom_call.1} parent=1 // pred_region
      _
    $region17: #{tpu_custom_call.1} parent=1 // pred_fallthru
      _
    // Predicated region
    $region18: #{tpu_custom_call.1} parent=1 // pred_check
      _
    $region19: #{tpu_custom_call.1} parent=1 // pred_check_branch
      %46 = sbr.rel (0) target = $region21
    $region20: #{tpu_custom_call.1} parent=1 // pred_region
      %s48 = ssub.s32 2048, 2048
      %49 = vsyncadd [#allocation6], %s48
      %s50 = sshll.u32 [#allocation7], 4
      %s51 = int_to_ptr.vmem [resolvable:$true] %s50
      %56 = dma.hbm_to_vmem [thread:$0]  %s4, 2048, %s51, [#allocation6], 128, 128, 8
    $region21: #{tpu_custom_call.1} parent=1 // pred_fallthru
      _
    // Predicated region
    $region22: #{tpu_custom_call.1} parent=1 // pred_check
      _
    $region23: #{tpu_custom_call.1} parent=1 // pred_check_branch
      %58 = sbr.rel (0) target = $region25
    $region24: #{tpu_custom_call.1} parent=1 // pred_region
      _
    $region25: #{tpu_custom_call.1} parent=1 // pred_fallthru
      _
    // Predicated region
    $region26: #{tpu_custom_call.1} parent=1 // pred_check
      _
    $region27: #{tpu_custom_call.1} parent=1 // pred_check_branch
      %60 = sbr.rel (0) target = $region29
    $region28: #{tpu_custom_call.1} parent=1 // pred_region
      %61 = dma.done [#allocation3], 256
    $region29: #{tpu_custom_call.1} parent=1 // pred_fallthru
      _
    // Predicated region
    $region30: #{tpu_custom_call.1} parent=1 // pred_check
      _
    $region31: #{tpu_custom_call.1} parent=1 // pred_check_branch
      %63 = sbr.rel (0) target = $region33
    $region32: #{tpu_custom_call.1} parent=1 // pred_region
      %64 = dma.done [#allocation6], 256
    $region33: #{tpu_custom_call.1} parent=1 // pred_fallthru
      _
    // Predicated region
    $region34: #{tpu_custom_call.1} parent=1 // pred_check
      _
    $region35: #{tpu_custom_call.1} parent=1 // pred_check_branch
      %66 = sbr.rel (0) target = $region37
    $region36: #{tpu_custom_call.1} parent=1 // pred_region
      %67 = dma.done [#allocation6], 2048
    $region37: #{tpu_custom_call.1} parent=1 // pred_fallthru
      _
    %v68 = vld [vmem:[#allocation2] sm:$0xff]
    %v69 = vld [vmem:[#allocation2 + $0x8] sm:$0xff]
    %v70 = vld [vmem:[#allocation5] sm:$0xff]
    %v71 = vld [vmem:[#allocation5 + $0x8] sm:$0xff]
    %v72 = vadd.f32 %v70, %v68
    %v73 = vadd.f32 %v71, %v69
    %74 = vst [vmem:[#allocation9] sm:$0xff] %v72
    %75 = vst [vmem:[#allocation9 + $0x8] sm:$0xff] %v73
    %76 = vadd.xlane.f32.xlu0 %v72
    %v77 = vpop.xlane.xlu0 %76
    %78 = vadd.xlane.f32.xlu0 %v73
    %v79 = vpop.xlane.xlu0 %78
    %v80 = vmul.f32 %v72, %v72
    %v81 = vmul.f32 %v73, %v73
    %82 = vadd.xlane.f32.xlu0 %v80
    %v83 = vpop.xlane.xlu0 %82
    %84 = vadd.xlane.f32.xlu0 %v81
    %v85 = vpop.xlane.xlu0 %84
    %v86 = vmul.f32 %v77, 0.03125
    %v87 = vmul.f32 %v79, 0.03125
    %v88 = vmul.f32 %v83, 0.03125
    %v89 = vmul.f32 %v85, 0.03125
    %v90 = vmul.f32 %v86, %v86
    %v91 = vmul.f32 %v87, %v87
    %v92 = vsub.f32 %v88, %v90
    %v93 = vsub.f32 %v89, %v91
    %v94 = vmax.f32 %v92, 0.0
    %v95 = vmax.f32 %v93, 0.0
    %v96 = vsub.f32 %v72, %v86
    %v97 = vsub.f32 %v73, %v87
    %v98 = vadd.f32 %v94, 1e-05
    %v99 = vadd.f32 %v95, 1e-05
    %v100 = vrsqrt.pop %v98
    %v101 = vrsqrt.pop %v99
    %v102 = vmul.f32 %v96, %v100
    %v103 = vmul.f32 %v97, %v101
    %v104 = vld [vmem:[%s2] sm:$0x1]
    %v106 = vlaneseq
    %v107 = vshrl.u32 %v106, 7
    %v108 = vsub.s32 0, %v107
    %v109 = vrot.slane %v104, %v108
    %v111 = vmul.f32 %v102, %v109
    %v112 = vmul.f32 %v103, %v109
    %v113 = vld [vmem:[%s3] sm:$0x1]
    %v115 = vlaneseq
    %v116 = vshrl.u32 %v115, 7
    %v117 = vsub.s32 0, %v116
    %v118 = vrot.slane %v113, %v117
    %v120 = vadd.f32 %v111, %v118
    %v121 = vadd.f32 %v112, %v118
    %v122 = vld [vmem:[#allocation7] sm:$0xff]
    %v123 = vld [vmem:[#allocation7 + $0x8] sm:$0xff]
    %v124 = vld [vmem:[#allocation7 + $0x10] sm:$0xff]
    %v125 = vld [vmem:[#allocation7 + $0x18] sm:$0xff]
    %v126 = vld [vmem:[#allocation7 + $0x20] sm:$0xff]
    %v127 = vld [vmem:[#allocation7 + $0x28] sm:$0xff]
    %v128 = vld [vmem:[#allocation7 + $0x30] sm:$0xff]
    %v129 = vld [vmem:[#allocation7 + $0x38] sm:$0xff]
    %v130 = vld [vmem:[#allocation7 + $0x40] sm:$0xff]
    %v131 = vld [vmem:[#allocation7 + $0x48] sm:$0xff]
    %v132 = vld [vmem:[#allocation7 + $0x50] sm:$0xff]
    %v133 = vld [vmem:[#allocation7 + $0x58] sm:$0xff]
    %v134 = vld [vmem:[#allocation7 + $0x60] sm:$0xff]
    %v135 = vld [vmem:[#allocation7 + $0x68] sm:$0xff]
    %v136 = vld [vmem:[#allocation7 + $0x70] sm:$0xff]
    %v137 = vld [vmem:[#allocation7 + $0x78] sm:$0xff]
    %v138 = vld [vmem:[%s5] sm:$0x1]
    %v140 = vlaneseq
    %v141 = vshrl.u32 %v140, 7
    %v142 = vsub.s32 0, %v141
    %v143 = vrot.slane %v138, %v142
    %145 = vmatprep.subr.mxu0 0.0
    %146 = vmatpush1.msra.mxu0 %v122
    %147 = vmatprep.subr.mxu0 0.0
    %148 = vmatpush1.msra.mxu0 %v123
    %149 = vmatprep.subr.mxu0 0.0
    %150 = vmatpush1.msra.mxu0 %v124
    %151 = vmatprep.subr.mxu0 0.0
    %152 = vmatpush1.msra.mxu0 %v125
    %153 = vmatprep.subr.mxu0 0.0
    %154 = vmatpush1.msra.mxu0 %v126
    %155 = vmatprep.subr.mxu0 0.0
    %156 = vmatpush1.msra.mxu0 %v127
    %157 = vmatprep.subr.mxu0 0.0
    %158 = vmatpush1.msra.mxu0 %v128
    %159 = vmatprep.subr.mxu0 0.0
    %160 = vmatpush1.msra.mxu0 %v129
    %161 = vmatprep.subr.mxu0 0.0
    %162 = vmatpush1.msra.mxu0 %v130
    %163 = vmatprep.subr.mxu0 0.0
    %164 = vmatpush1.msra.mxu0 %v131
    %165 = vmatprep.subr.mxu0 0.0
    %166 = vmatpush1.msra.mxu0 %v132
    %167 = vmatprep.subr.mxu0 0.0
    %168 = vmatpush1.msra.mxu0 %v133
    %169 = vmatprep.subr.mxu0 0.0
    %170 = vmatpush1.msra.mxu0 %v134
    %171 = vmatprep.subr.mxu0 0.0
    %172 = vmatpush1.msra.mxu0 %v135
    %173 = vmatprep.subr.mxu0 0.0
    %174 = vmatpush1.msra.mxu0 %v136
    %175 = vmatprep.subr.mxu0 0.0
    %176 = vmatpush1.msra.mxu0 %v137
    %177 = vmatprep.subr.mxu0 0.0
    %178 = vmatpush1.msra.mxu0 0.0
    %179 = vmatprep.subr.mxu0 0.0
    %180 = vmatpush1.msra.mxu0 0.0
    %181 = vmatprep.subr.mxu0 0.0
    %182 = vmatpush1.msra.mxu0 0.0
    %183 = vmatprep.subr.mxu0 0.0
    %184 = vmatpush1.msra.mxu0 0.0
    %185 = vmatprep.subr.mxu0 0.0
    %186 = vmatpush1.msra.mxu0 0.0
    %187 = vmatprep.subr.mxu0 0.0
    %188 = vmatpush1.msra.mxu0 0.0
    %189 = vmatprep.subr.mxu0 0.0
    %190 = vmatpush1.msra.mxu0 0.0
    %191 = vmatprep.subr.mxu0 0.0
    %192 = vmatpush1.msra.mxu0 0.0
    %193 = vmatprep.subr.mxu0 0.0
    %194 = vmatpush1.msra.mxu0 0.0
    %195 = vmatprep.subr.mxu0 0.0
    %196 = vmatpush1.msra.mxu0 0.0
    %197 = vmatprep.subr.mxu0 0.0
    %198 = vmatpush1.msra.mxu0 0.0
    %199 = vmatprep.subr.mxu0 0.0
    %200 = vmatpush1.msra.mxu0 0.0
    %201 = vmatprep.subr.mxu0 0.0
    %202 = vmatpush1.msra.mxu0 0.0
    %203 = vmatprep.subr.mxu0 0.0
    %204 = vmatpush1.msra.mxu0 0.0
    %205 = vmatprep.subr.mxu0 0.0
    %206 = vmatpush1.msra.mxu0 0.0
    %207 = vmatprep.subr.mxu0 0.0
    %208 = vmatpush1.msra.mxu0 0.0
    %209 = vmatprep.mubr.f32.mxu0 0.0
    %210 = vmatmul.mubr.f32.gmra.mrb[0].mxu0 %v120
    %v211 = vpop.f32.mrb[0].mxu0
    %v212 = vadd.f32 %v143, %v211
    %v213 = vpop.f32.mrb[0].mxu0
    %214 = vmatprep.mubr.f32.mxu0 0.0
    %215 = vmatmul.mubr.f32.gmra.mrb[0].mxu0 %v121
    %v216 = vpop.f32.mrb[0].mxu0
    %v217 = vadd.f32 %v143, %v216
    %v218 = vpop.f32.mrb[0].mxu0
    %219 = vdwg.mxu0
    %220 = vst [vmem:[#allocation8] sm:$0xff] %v212
    %221 = vst [vmem:[#allocation8 + $0x8] sm:$0xff] %v217
    // Predicated region
    $region38: #{tpu_custom_call.1} parent=1 // pred_check
      _
    $region39: #{tpu_custom_call.1} parent=1 // pred_check_branch
      %223 = sbr.rel (0) target = $region41
    $region40: #{tpu_custom_call.1} parent=1 // pred_region
      %s225 = ssub.s32 256, 256
      %226 = vsyncadd [#allocation4], %s225
      %s227 = sshll.u32 [#allocation8], 4
      %s228 = int_to_ptr.vmem [resolvable:$true] %s227
      %233 = dma.vmem_to_hbm [thread:$0]  %s228, 256, %s6, [#allocation4], 128, 128, 8
    $region41: #{tpu_custom_call.1} parent=1 // pred_fallthru
      _
    // Predicated region
    $region42: #{tpu_custom_call.1} parent=1 // pred_check
      _
    $region43: #{tpu_custom_call.1} parent=1 // pred_check_branch
      %235 = sbr.rel (0) target = $region45
    $region44: #{tpu_custom_call.1} parent=1 // pred_region
      %s237 = ssub.s32 256, 256
      %238 = vsyncadd [#allocation10], %s237
      %s239 = sshll.u32 [#allocation9], 4
      %s240 = int_to_ptr.vmem [resolvable:$true] %s239
      %245 = dma.vmem_to_hbm [thread:$0]  %s240, 256, %s7, [#allocation10], 128, 128, 8
    $region45: #{tpu_custom_call.1} parent=1 // pred_fallthru
      _
    // Predicated region
    $region46: #{tpu_custom_call.1} parent=1 // pred_check
      _
    $region47: #{tpu_custom_call.1} parent=1 // pred_check_branch
      %247 = sbr.rel (0) target = $region49
    $region48: #{tpu_custom_call.1} parent=1 // pred_region
      %248 = dma.done [#allocation4], 256
    $region49: #{tpu_custom_call.1} parent=1 // pred_fallthru
      _
    // Predicated region
    $region50: #{tpu_custom_call.1} parent=1 // pred_check
      _
    $region51: #{tpu_custom_call.1} parent=1 // pred_check_branch
      %250 = sbr.rel (0) target = $region53
    $region52: #{tpu_custom_call.1} parent=1 // pred_region
      %251 = dma.done [#allocation10], 256
    $region53: #{tpu_custom_call.1} parent=1 // pred_fallthru
      _
    %252 = vsyncpa [#allocation3], 1
    %253 = vsyncpa [#allocation6], 1
    %254 = vsyncpa [#allocation4], 1
    %255 = vsyncpa [#allocation10], 1

</llo_original>
